<compile_context>
chip_gen: v7x
topology: tpu7x:2x2x1
jax: 0.10.0
libtpu: 0.0.40
codegen_flags: <defaults>
</compile_context>

<pallas_src>
import jax
import jax.numpy as jnp
from jax.experimental import pallas as pl
from jax.experimental.pallas import tpu as pltpu

FC2_SIZE = 100
_LANE = 128
_SUBLANE = 8


def _round_up(x, m):
    return ((x + m - 1) // m) * m


def _cdiv(a, b):
    return -(-a // b)


def _vmem_capacity_bytes():
    """Physical VMEM per core; fallback is the v7x per-TC size (64 MiB)."""
    try:
        info = pltpu.get_tpu_info()
        cap = int(getattr(info, "vmem_capacity_bytes", 0))
        if cap > 0:
            return cap
    except Exception:
        pass
    return 64 << 20


def _mlp_kernel(x_ref, w1_ref, b1_ref, w2_ref, b2_ref, w3_ref, b3_ref,
                out_ref, h1_ref, h2_ref):
    x = x_ref[...]

    # fc1: [TB, D] @ [D, F1p] + b1   (f32 accumulation on the MXU)
    h1 = jnp.dot(x, w1_ref[...], preferred_element_type=jnp.float32) + b1_ref[...]
    h1_ref[...] = h1.astype(h1_ref.dtype)
    a1 = jnp.maximum(h1, 0.0).astype(w2_ref.dtype)

    # fc2: [TB, F1p] @ [F1p, F2p] + b2
    h2 = jnp.dot(a1, w2_ref[...], preferred_element_type=jnp.float32) + b2_ref[...]
    h2_ref[...] = h2.astype(h2_ref.dtype)
    a2 = jnp.maximum(h2, 0.0).astype(w3_ref.dtype)

    # fc3: [TB, F2p] @ [F2p, C] + b3  (C left unpadded -> narrow masked store)
    out = jnp.dot(a2, w3_ref[...], preferred_element_type=jnp.float32) + b3_ref[...]
    out_ref[...] = out.astype(out_ref.dtype)


def prepare_params(params, compute_dtype=jnp.float32):
    """Pad / cast weights ONCE, outside the per-call hot path.

    Hidden feature dims (F1, F2) are zero-padded to multiples of 128 so the
    hidden-activation stores are lane-dense; the tiny class dim C stays
    unpadded.  Biases stay f32 (added after f32 accumulation).
    """
    w1, b1 = params["w1"], params["b1"]
    w2, b2 = params["w2"], params["b2"]
    w3, b3 = params["w3"], params["b3"]
    D, F1 = w1.shape
    F2 = w2.shape[1]
    C = w3.shape[1]
    F1p = _round_up(F1, _LANE)
    F2p = _round_up(F2, _LANE)
    cd = jnp.dtype(compute_dtype)

    def pad_w(w, shape):
        wc = w.astype(cd)
        if wc.shape == shape:
            return wc
        return jnp.zeros(shape, cd).at[: w.shape[0], : w.shape[1]].set(wc)

    def pad_b(b, n):
        bc = b.astype(jnp.float32).reshape(1, -1)
        if bc.shape[1] == n:
            return bc
        return jnp.zeros((1, n), jnp.float32).at[:, : bc.shape[1]].set(bc)

    return {
        "w1": pad_w(w1, (D, F1p)), "b1": pad_b(b1, F1p),
        "w2": pad_w(w2, (F1p, F2p)), "b2": pad_b(b2, F2p),
        "w3": pad_w(w3, (F2p, C)), "b3": pad_b(b3, C),
        "dims": (D, F1, F2, C, F1p, F2p),
        "compute_dtype": cd,
    }


def teacher_mlp_forward(x, prep, *, block_b=1024, out_dtype=jnp.float32):
    """x: [B, input_size]. prep: output of prepare_params().

    Returns (logits [B, classes], h1_pre_relu [B, 2*input_size],
             h2_pre_relu [B, FC2_SIZE]), dtype = out_dtype.
    """
    D, F1, F2, C, F1p, F2p = prep["dims"]
    cd = prep["compute_dtype"]
    B = x.shape[0]
    assert x.shape[1] == D, f"expected input_size={D}, got {x.shape[1]}"

    # Balanced batch tiling: at least ceil(B / block_b) tiles, at least 2 tiles
    # when B >= 16 (v7x dual-TC split), tiles sized so the last one never
    # carries ~a whole block of padding.
    num_tiles = _cdiv(B, block_b)
    if B >= 2 * _SUBLANE:
        num_tiles = max(num_tiles, 2)
    TB = _round_up(_cdiv(B, num_tiles), _SUBLANE)
    num_tiles = _cdiv(B, TB)
    Bp = num_tiles * TB

    xc = jnp.asarray(x, cd)
    if Bp != B:
        xc = jnp.zeros((Bp, D), cd).at[:B, :].set(xc)

    # VMEM budget: 1x resident weights (single-buffered) + 2x (double-buffered)
    # activation tiles + intermediates + scratch, clamped to 85% of physical
    # VMEM for this generation.
    cap = _vmem_capacity_bytes()
    bpe_c = jnp.dtype(cd).itemsize
    bpe_o = jnp.dtype(out_dtype).itemsize
    weight_bytes = (D * F1p + F1p * F2p + F2p * C) * bpe_c + (F1p + F2p + C) * 4
    if weight_bytes > int(0.6 * cap):
        # TODO(synk): stream weights via a K-tiled ("arbitrary") grid axis with
        # an f32 accumulator instead of keeping them fully VMEM-resident.
        raise ValueError(
            f"resident weights ({weight_bytes / 2**20:.1f} MiB) exceed the VMEM "
            f"budget ({0.6 * cap / 2**20:.1f} MiB); reduce input_size or use "
            f"compute_dtype=bfloat16.")
    in_tile_bytes = TB * D * bpe_c
    out_tile_bytes = TB * (F1p + F2p + C) * bpe_o
    inter_bytes = 2 * TB * (F1p + F2p) * 4   # f32 h1/h2 + relu'd copies
    est = weight_bytes + 2 * (in_tile_bytes + out_tile_bytes) + inter_bytes + (4 << 20)
    vmem_limit = int(min(max(est, 16 << 20), int(0.85 * cap)))

    # Whole-array VMEM residency: one copy, no double-buffering, no re-DMA.
    resident = pl.BlockSpec(memory_space=pltpu.MemorySpace.VMEM)

    def act_spec(n):
        return pl.BlockSpec((TB, n), lambda i: (i, 0))

    out_shapes = (
        jax.ShapeDtypeStruct((Bp, C), out_dtype),     # logits (unpadded lanes)
        jax.ShapeDtypeStruct((Bp, F1p), out_dtype),   # hidden1 pre-ReLU
        jax.ShapeDtypeStruct((Bp, F2p), out_dtype),   # hidden2 pre-ReLU
    )

    logits_p, h1_p, h2_p = pl.pallas_call(
        _mlp_kernel,
        out_shape=out_shapes,
        grid=(num_tiles,),
        in_specs=[
            act_spec(D),            # x tile (pipelined over batch)
            resident, resident,     # w1, b1
            resident, resident,     # w2, b2
            resident, resident,     # w3, b3
        ],
        out_specs=(act_spec(C), act_spec(F1p), act_spec(F2p)),
        compiler_params=pltpu.CompilerParams(
            dimension_semantics=("parallel",),   # shard batch across v7x TCs
            vmem_limit_bytes=vmem_limit,
        ),
    )(xc, prep["w1"], prep["b1"], prep["w2"], prep["b2"], prep["w3"], prep["b3"])

    # Slice only where padding actually exists.
    logits = logits_p if Bp == B else logits_p[:B]
    h1 = h1_p if (Bp == B and F1p == F1) else h1_p[:B, :F1]
    h2 = h2_p if (Bp == B and F2p == F2) else h2_p[:B, :F2]
    return logits, h1, h2


def init_params(key, input_size, classes):
    """Matches TeacherMLP.initialize_weights: W ~ N(0, 0.1), b = 0."""
    fc1_size = 2 * input_size
    k1, k2, k3 = jax.random.split(key, 3)
    # stored as [in, out] (PyTorch stores [out, in]; math is identical)
    w1 = 0.1 * jax.random.normal(k1, (input_size, fc1_size), jnp.float32)
    w2 = 0.1 * jax.random.normal(k2, (fc1_size, FC2_SIZE), jnp.float32)
    w3 = 0.1 * jax.random.normal(k3, (FC2_SIZE, classes), jnp.float32)
    return {
        "w1": w1, "b1": jnp.zeros((fc1_size,), jnp.float32),
        "w2": w2, "b2": jnp.zeros((FC2_SIZE,), jnp.float32),
        "w3": w3, "b3": jnp.zeros((classes,), jnp.float32),
    }


def _reference(x, p):
    h1 = x @ p["w1"] + p["b1"]
    h2 = jnp.maximum(h1, 0.0) @ p["w2"] + p["b2"]
    out = jnp.maximum(h2, 0.0) @ p["w3"] + p["b3"]
    return out, h1, h2


if __name__ == "__main__":
    key = jax.random.PRNGKey(0)
    kx, kx2, kp = jax.random.split(key, 3)

    batch = 8
    input_size = 64      # -> FC1_SIZE = 128, FC2_SIZE = 100
    classes = 10

    x = jax.random.normal(kx, (batch, input_size), jnp.float32)
    params = init_params(kp, input_size, classes)
    prep = prepare_params(params)                       # pad/cast weights once

    # f32 path: must match the plain-JAX reference tightly.
    logits, h1, h2 = jax.block_until_ready(teacher_mlp_forward(x, prep))
    r_logits, r_h1, r_h2 = _reference(x, params)
    assert logits.shape == (batch, classes)
    assert h1.shape == (batch, 2 * input_size) and h2.shape == (batch, FC2_SIZE)
    assert jnp.allclose(logits, r_logits, atol=1e-4, rtol=1e-4)
    assert jnp.allclose(h1, r_h1, atol=1e-4, rtol=1e-4)
    assert jnp.allclose(h2, r_h2, atol=1e-4, rtol=1e-4)

    # Multi-tile balanced-ragged path (B=40, block_b=16 -> 3 tiles of 16 rows,
    # exercises batch padding, output slicing and the "parallel" grid).
    x2 = jax.random.normal(kx2, (40, input_size), jnp.float32)
    l2, h1_2, h2_2 = jax.block_until_ready(
        teacher_mlp_forward(x2, prep, block_b=16))
    r2, rh1_2, rh2_2 = _reference(x2, params)
    assert l2.shape == (40, classes)
    assert jnp.allclose(l2, r2, atol=1e-4, rtol=1e-4)
    assert jnp.allclose(h1_2, rh1_2, atol=1e-4, rtol=1e-4)
    assert jnp.allclose(h2_2, rh2_2, atol=1e-4, rtol=1e-4)

    # Ragged small batch (sub-sublane padding path).
    x5 = x[:5]
    l5, _, _ = jax.block_until_ready(teacher_mlp_forward(x5, prep))
    assert l5.shape == (5, classes)
    assert jnp.allclose(l5, r_logits[:5], atol=1e-4, rtol=1e-4)

    # bf16 compute + bf16 output storage (v6e/v7x fast path): shape, finiteness
    # and loose numerical agreement with the fp32 reference.
    prep_bf16 = prepare_params(params, compute_dtype=jnp.bfloat16)
    lb, h1b, h2b = jax.block_until_ready(
        teacher_mlp_forward(x, prep_bf16, out_dtype=jnp.bfloat16))
    assert lb.shape == (batch, classes) and lb.dtype == jnp.bfloat16
    assert bool(jnp.all(jnp.isfinite(lb.astype(jnp.float32))))
    assert float(jnp.max(jnp.abs(lb.astype(jnp.float32) - r_logits))) < 0.25

    print("KERNEL_OK")
</pallas_src>

<mosaic_0001>
module attributes {stable_mosaic.version = 11 : i64} {
  func.func @_mlp_kernel(%arg0: i32, %arg1: memref<8x64xf32, #tpu.memory_space<vmem>>, %arg2: memref<64x128xf32, #tpu.memory_space<vmem>>, %arg3: memref<1x128xf32, #tpu.memory_space<vmem>>, %arg4: memref<128x128xf32, #tpu.memory_space<vmem>>, %arg5: memref<1x128xf32, #tpu.memory_space<vmem>>, %arg6: memref<128x10xf32, #tpu.memory_space<vmem>>, %arg7: memref<1x10xf32, #tpu.memory_space<vmem>>, %arg8: memref<8x10xf32, #tpu.memory_space<vmem>>, %arg9: memref<8x128xf32, #tpu.memory_space<vmem>>, %arg10: memref<8x128xf32, #tpu.memory_space<vmem>>) attributes {dimension_semantics = [#tpu.dimension_semantics<parallel>], iteration_bounds = array<i64: 1>, scalar_prefetch = 0 : i64, scratch_operands = 0 : i64, tpu.core_type = #tpu.core_type<tc>, window_params = [{transform_indices = @transform_0, window_bounds = array<i64: 8, 64>}, {pipeline_mode = #tpu.pipeline_mode<synchronous>, transform_indices = @transform_1, window_bounds = array<i64: 64, 128>}, {pipeline_mode = #tpu.pipeline_mode<synchronous>, transform_indices = @transform_2, window_bounds = array<i64: 1, 128>}, {pipeline_mode = #tpu.pipeline_mode<synchronous>, transform_indices = @transform_3, window_bounds = array<i64: 128, 128>}, {pipeline_mode = #tpu.pipeline_mode<synchronous>, transform_indices = @transform_4, window_bounds = array<i64: 1, 128>}, {pipeline_mode = #tpu.pipeline_mode<synchronous>, transform_indices = @transform_5, window_bounds = array<i64: 128, 10>}, {pipeline_mode = #tpu.pipeline_mode<synchronous>, transform_indices = @transform_6, window_bounds = array<i64: 1, 10>}, {transform_indices = @transform_7, window_bounds = array<i64: 8, 10>}, {transform_indices = @transform_8, window_bounds = array<i64: 8, 128>}, {transform_indices = @transform_9, window_bounds = array<i64: 8, 128>}]} {
    %c0 = arith.constant 0 : index
    %c0_0 = arith.constant 0 : index
    %0 = vector.load %arg1[%c0, %c0_0] : memref<8x64xf32, #tpu.memory_space<vmem>>, vector<8x64xf32>
    %c0_1 = arith.constant 0 : index
    %c0_2 = arith.constant 0 : index
    %1 = vector.load %arg2[%c0_1, %c0_2] : memref<64x128xf32, #tpu.memory_space<vmem>>, vector<64x128xf32>
    %cst = arith.constant dense<0.000000e+00> : vector<8x128xf32>
    %2 = tpu.matmul %0, %1, %cst {dimension_numbers = #tpu.dot_dimension_numbers<[1], [0], [0], [1], [0, 0, 1, 1], [], []>} : vector<8x64xf32>, vector<64x128xf32>, vector<8x128xf32> -> vector<8x128xf32>
    %c0_3 = arith.constant 0 : index
    %c0_4 = arith.constant 0 : index
    %3 = vector.load %arg3[%c0_3, %c0_4] : memref<1x128xf32, #tpu.memory_space<vmem>>, vector<1x128xf32>
    %4 = vector.broadcast %3 : vector<1x128xf32> to vector<8x128xf32>
    %5 = arith.addf %2, %4 : vector<8x128xf32>
    %c0_5 = arith.constant 0 : index
    %c0_6 = arith.constant 0 : index
    %6 = vector.load %arg9[%c0_5, %c0_6] : memref<8x128xf32, #tpu.memory_space<vmem>>, vector<8x128xf32>
    tpu.vector_store %arg9[%c0_5, %c0_6], %5 {strides = array<i32>} : memref<8x128xf32, #tpu.memory_space<vmem>>, vector<8x128xf32>,
    %cst_7 = arith.constant 0.000000e+00 : f32
    %7 = vector.broadcast %cst_7 : f32 to vector<8x128xf32>
    %8 = arith.maximumf %5, %7 : vector<8x128xf32>
    %c0_8 = arith.constant 0 : index
    %c0_9 = arith.constant 0 : index
    %9 = vector.load %arg4[%c0_8, %c0_9] : memref<128x128xf32, #tpu.memory_space<vmem>>, vector<128x128xf32>
    %cst_10 = arith.constant dense<0.000000e+00> : vector<8x128xf32>
    %10 = tpu.matmul %8, %9, %cst_10 {dimension_numbers = #tpu.dot_dimension_numbers<[1], [0], [0], [1], [0, 0, 1, 1], [], []>} : vector<8x128xf32>, vector<128x128xf32>, vector<8x128xf32> -> vector<8x128xf32>
    %c0_11 = arith.constant 0 : index
    %c0_12 = arith.constant 0 : index
    %11 = vector.load %arg5[%c0_11, %c0_12] : memref<1x128xf32, #tpu.memory_space<vmem>>, vector<1x128xf32>
    %12 = vector.broadcast %11 : vector<1x128xf32> to vector<8x128xf32>
    %13 = arith.addf %10, %12 : vector<8x128xf32>
    %c0_13 = arith.constant 0 : index
    %c0_14 = arith.constant 0 : index
    %14 = vector.load %arg10[%c0_13, %c0_14] : memref<8x128xf32, #tpu.memory_space<vmem>>, vector<8x128xf32>
    tpu.vector_store %arg10[%c0_13, %c0_14], %13 {strides = array<i32>} : memref<8x128xf32, #tpu.memory_space<vmem>>, vector<8x128xf32>,
    %cst_15 = arith.constant 0.000000e+00 : f32
    %15 = vector.broadcast %cst_15 : f32 to vector<8x128xf32>
    %16 = arith.maximumf %13, %15 : vector<8x128xf32>
    %c0_16 = arith.constant 0 : index
    %c0_17 = arith.constant 0 : index
    %17 = vector.load %arg6[%c0_16, %c0_17] : memref<128x10xf32, #tpu.memory_space<vmem>>, vector<128x10xf32>
    %cst_18 = arith.constant dense<0.000000e+00> : vector<8x10xf32>
    %18 = tpu.matmul %16, %17, %cst_18 {dimension_numbers = #tpu.dot_dimension_numbers<[1], [0], [0], [1], [0, 0, 1, 1], [], []>} : vector<8x128xf32>, vector<128x10xf32>, vector<8x10xf32> -> vector<8x10xf32>
    %c0_19 = arith.constant 0 : index
    %c0_20 = arith.constant 0 : index
    %19 = vector.load %arg7[%c0_19, %c0_20] : memref<1x10xf32, #tpu.memory_space<vmem>>, vector<1x10xf32>
    %20 = vector.broadcast %19 : vector<1x10xf32> to vector<8x10xf32>
    %21 = arith.addf %18, %20 : vector<8x10xf32>
    %c0_21 = arith.constant 0 : index
    %c0_22 = arith.constant 0 : index
    %22 = vector.load %arg8[%c0_21, %c0_22] : memref<8x10xf32, #tpu.memory_space<vmem>>, vector<8x10xf32>
    tpu.vector_store %arg8[%c0_21, %c0_22], %21 {strides = array<i32>} : memref<8x10xf32, #tpu.memory_space<vmem>>, vector<8x10xf32>,
    return
  }
  func.func @transform_0(%arg0: i32) -> (i32, i32) {
    %c0_i32 = arith.constant 0 : i32
    %c0_i32_0 = arith.constant 0 : i32
    return %arg0, %c0_i32 : i32, i32
  }
  func.func @transform_1(%arg0: i32) -> (i32, i32) {
    %c0_i32 = arith.constant 0 : i32
    %c0_i32_0 = arith.constant 0 : i32
    %c0_i32_1 = arith.constant 0 : i32
    return %c0_i32, %c0_i32_0 : i32, i32
  }
  func.func @transform_2(%arg0: i32) -> (i32, i32) {
    %c0_i32 = arith.constant 0 : i32
    %c0_i32_0 = arith.constant 0 : i32
    %c0_i32_1 = arith.constant 0 : i32
    return %c0_i32, %c0_i32_0 : i32, i32
  }
  func.func @transform_3(%arg0: i32) -> (i32, i32) {
    %c0_i32 = arith.constant 0 : i32
    %c0_i32_0 = arith.constant 0 : i32
    %c0_i32_1 = arith.constant 0 : i32
    return %c0_i32, %c0_i32_0 : i32, i32
  }
  func.func @transform_4(%arg0: i32) -> (i32, i32) {
    %c0_i32 = arith.constant 0 : i32
    %c0_i32_0 = arith.constant 0 : i32
    %c0_i32_1 = arith.constant 0 : i32
    return %c0_i32, %c0_i32_0 : i32, i32
  }
  func.func @transform_5(%arg0: i32) -> (i32, i32) {
    %c0_i32 = arith.constant 0 : i32
    %c0_i32_0 = arith.constant 0 : i32
    %c0_i32_1 = arith.constant 0 : i32
    return %c0_i32, %c0_i32_0 : i32, i32
  }
  func.func @transform_6(%arg0: i32) -> (i32, i32) {
    %c0_i32 = arith.constant 0 : i32
    %c0_i32_0 = arith.constant 0 : i32
    %c0_i32_1 = arith.constant 0 : i32
    return %c0_i32, %c0_i32_0 : i32, i32
  }
  func.func @transform_7(%arg0: i32) -> (i32, i32) {
    %c0_i32 = arith.constant 0 : i32
    %c0_i32_0 = arith.constant 0 : i32
    return %arg0, %c0_i32 : i32, i32
  }
  func.func @transform_8(%arg0: i32) -> (i32, i32) {
    %c0_i32 = arith.constant 0 : i32
    %c0_i32_0 = arith.constant 0 : i32
    return %arg0, %c0_i32 : i32, i32
  }
  func.func @transform_9(%arg0: i32) -> (i32, i32) {
    %c0_i32 = arith.constant 0 : i32
    %c0_i32_0 = arith.constant 0 : i32
    return %arg0, %c0_i32 : i32, i32
  }
}

</mosaic_0001>

<llo_original>
// kernel: tpu_custom_call.1
$region0: #{tpu_custom_call.1}
  #allocation0 [shape = 'u32[]', space=smem, size = 0x4, offset = 0x4, fixed_abs, tag = 'smem constant byte address 0x4 - core index']
  #allocation1 [shape = 'u32[144,128]{1,0:T(1,128)}', space=vmem, size = 0x12000, scoped, tag = 'internal scratch']
  %s0 = inlined_call_operand.vmem [shape: f32[8,64], index: 0, kind: input, shape index: {}]
  %s1 = inlined_call_operand.hbm [shape: f32[64,128], index: 1, kind: input, shape index: {}]
  %s2 = inlined_call_operand.vmem [shape: f32[1,128], index: 2, kind: input, shape index: {}]
  %s3 = inlined_call_operand.vmem [shape: f32[128,128], index: 3, kind: input, shape index: {}]
  %s4 = inlined_call_operand.vmem [shape: f32[1,128], index: 4, kind: input, shape index: {}]
  %s5 = inlined_call_operand.vmem [shape: f32[128,10], index: 5, kind: input, shape index: {}]
  %s6 = inlined_call_operand.vmem [shape: f32[1,10], index: 6, kind: input, shape index: {}]
  %s7 = inlined_call_operand.hbm [shape: f32[8,10], index: 7, kind: output, shape index: {0}]
  %s8 = inlined_call_operand.hbm [shape: f32[8,128], index: 8, kind: output, shape index: {1}]
  %s9 = inlined_call_operand.hbm [shape: f32[8,128], index: 9, kind: output, shape index: {2}]
  %10 = xla_tuple %s7, %s8, %s9
  %s11 = sld [smem:[#allocation0]]
  $region58: #{tpu_custom_call.1} parent=0
    _
  %s13 = ssub.s32 1, %s11
  %s14 = scalar_select 0, %s13, %s11
  $region1: #{tpu_custom_call.1} parent=0
    #allocation2 [shape = 'u8[32768]{0}', space=vmem, size = 0x8000, scoped, tag = 'input window, operand 1, single buffered']
    #allocation3 [shape = 's32[1]{0}', space=sflag, size = 0x4, scoped, tag = 'scoped memory for tpu_custom_call.1']
    #allocation4 [shape = 's32[1]{0}', space=sflag, size = 0x4, scoped, tag = 'scoped memory for tpu_custom_call.1']
    #allocation5 [shape = 'u8[4096]{0}', space=vmem, size = 0x1000, scoped, tag = 'output window, operand 0, single buffered']
    #allocation6 [shape = 'u8[4096]{0}', space=vmem, size = 0x1000, scoped, tag = 'output window, operand 1, single buffered']
    #allocation7 [shape = 's32[1]{0}', space=sflag, size = 0x4, scoped, tag = 'scoped memory for tpu_custom_call.1']
    #allocation8 [shape = 'u8[4096]{0}', space=vmem, size = 0x1000, scoped, tag = 'output window, operand 2, single buffered']
    %15 = vsyncpa [#allocation3], 0
    %16 = vsyncpa [#allocation4], 0
    %17 = vsyncpa [#allocation7], 0
    // Predicated region
    $region2: #{tpu_custom_call.1} parent=1 // pred_check
      _
    $region3: #{tpu_custom_call.1} parent=1 // pred_check_branch
      %19 = sbr.rel (0) target = $region5
    $region4: #{tpu_custom_call.1} parent=1 // pred_region
      _
    $region5: #{tpu_custom_call.1} parent=1 // pred_fallthru
      _
    // Predicated region
    $region6: #{tpu_custom_call.1} parent=1 // pred_check
      _
    $region7: #{tpu_custom_call.1} parent=1 // pred_check_branch
      %21 = sbr.rel (0) target = $region9
    $region8: #{tpu_custom_call.1} parent=1 // pred_region
      %s23 = ssub.s32 1024, 1024
      %24 = vsyncadd [#allocation3], %s23
      %s25 = sshll.u32 [#allocation2], 4
      %s26 = int_to_ptr.vmem [resolvable:$true] %s25
      %31 = dma.hbm_to_vmem [thread:$0]  %s1, 1024, %s26, [#allocation3], 128, 128, 8
    $region9: #{tpu_custom_call.1} parent=1 // pred_fallthru
      _
    // Predicated region
    $region10: #{tpu_custom_call.1} parent=1 // pred_check
      _
    $region11: #{tpu_custom_call.1} parent=1 // pred_check_branch
      %33 = sbr.rel (0) target = $region13
    $region12: #{tpu_custom_call.1} parent=1 // pred_region
      _
    $region13: #{tpu_custom_call.1} parent=1 // pred_fallthru
      _
    // Predicated region
    $region14: #{tpu_custom_call.1} parent=1 // pred_check
      _
    $region15: #{tpu_custom_call.1} parent=1 // pred_check_branch
      %35 = sbr.rel (0) target = $region17
    $region16: #{tpu_custom_call.1} parent=1 // pred_region
      _
    $region17: #{tpu_custom_call.1} parent=1 // pred_fallthru
      _
    // Predicated region
    $region18: #{tpu_custom_call.1} parent=1 // pred_check
      _
    $region19: #{tpu_custom_call.1} parent=1 // pred_check_branch
      %37 = sbr.rel (0) target = $region21
    $region20: #{tpu_custom_call.1} parent=1 // pred_region
      _
    $region21: #{tpu_custom_call.1} parent=1 // pred_fallthru
      _
    // Predicated region
    $region22: #{tpu_custom_call.1} parent=1 // pred_check
      _
    $region23: #{tpu_custom_call.1} parent=1 // pred_check_branch
      %39 = sbr.rel (0) target = $region25
    $region24: #{tpu_custom_call.1} parent=1 // pred_region
      _
    $region25: #{tpu_custom_call.1} parent=1 // pred_fallthru
      _
    // Predicated region
    $region26: #{tpu_custom_call.1} parent=1 // pred_check
      _
    $region27: #{tpu_custom_call.1} parent=1 // pred_check_branch
      %41 = sbr.rel (0) target = $region29
    $region28: #{tpu_custom_call.1} parent=1 // pred_region
      _
    $region29: #{tpu_custom_call.1} parent=1 // pred_fallthru
      _
    // Predicated region
    $region30: #{tpu_custom_call.1} parent=1 // pred_check
      _
    $region31: #{tpu_custom_call.1} parent=1 // pred_check_branch
      %43 = sbr.rel (0) target = $region33
    $region32: #{tpu_custom_call.1} parent=1 // pred_region
      %44 = dma.done [#allocation3], 1024
    $region33: #{tpu_custom_call.1} parent=1 // pred_fallthru
      _
    %v45 = vld [vmem:[%s0] sm:$0xff]
    %v46 = vld [vmem:[#allocation2] sm:$0xff]
    %v47 = vld [vmem:[#allocation2 + $0x8] sm:$0xff]
    %v48 = vld [vmem:[#allocation2 + $0x10] sm:$0xff]
    %v49 = vld [vmem:[#allocation2 + $0x18] sm:$0xff]
    %v50 = vld [vmem:[#allocation2 + $0x20] sm:$0xff]
    %v51 = vld [vmem:[#allocation2 + $0x28] sm:$0xff]
    %v52 = vld [vmem:[#allocation2 + $0x30] sm:$0xff]
    %v53 = vld [vmem:[#allocation2 + $0x38] sm:$0xff]
    %v54 = vld [vmem:[%s2] sm:$0x1]
    %v56 = vlaneseq
    %v57 = vshrl.u32 %v56, 7
    %v58 = vsub.s32 0, %v57
    %v59 = vrot.slane %v54, %v58
    %vm61 = vcmask 523264
    %v63 = vsel %vm61, %v45, 0
    %65 = vmatprep.subr.mxu0 0.0
    %66 = vmatpush1.msra.mxu0 %v46
    %67 = vmatprep.subr.mxu0 0.0
    %68 = vmatpush1.msra.mxu0 %v47
    %69 = vmatprep.subr.mxu0 0.0
    %70 = vmatpush1.msra.mxu0 %v48
    %71 = vmatprep.subr.mxu0 0.0
    %72 = vmatpush1.msra.mxu0 %v49
    %73 = vmatprep.subr.mxu0 0.0
    %74 = vmatpush1.msra.mxu0 %v50
    %75 = vmatprep.subr.mxu0 0.0
    %76 = vmatpush1.msra.mxu0 %v51
    %77 = vmatprep.subr.mxu0 0.0
    %78 = vmatpush1.msra.mxu0 %v52
    %79 = vmatprep.subr.mxu0 0.0
    %80 = vmatpush1.msra.mxu0 %v53
    %81 = vmatprep.subr.mxu0 0.0
    %82 = vmatpush1.msra.mxu0 0.0
    %83 = vmatprep.subr.mxu0 0.0
    %84 = vmatpush1.msra.mxu0 0.0
    %85 = vmatprep.subr.mxu0 0.0
    %86 = vmatpush1.msra.mxu0 0.0
    %87 = vmatprep.subr.mxu0 0.0
    %88 = vmatpush1.msra.mxu0 0.0
    %89 = vmatprep.subr.mxu0 0.0
    %90 = vmatpush1.msra.mxu0 0.0
    %91 = vmatprep.subr.mxu0 0.0
    %92 = vmatpush1.msra.mxu0 0.0
    %93 = vmatprep.subr.mxu0 0.0
    %94 = vmatpush1.msra.mxu0 0.0
    %95 = vmatprep.subr.mxu0 0.0
    %96 = vmatpush1.msra.mxu0 0.0
    %97 = vmatprep.subr.mxu0 0.0
    %98 = vmatpush1.msra.mxu0 0.0
    %99 = vmatprep.subr.mxu0 0.0
    %100 = vmatpush1.msra.mxu0 0.0
    %101 = vmatprep.subr.mxu0 0.0
    %102 = vmatpush1.msra.mxu0 0.0
    %103 = vmatprep.subr.mxu0 0.0
    %104 = vmatpush1.msra.mxu0 0.0
    %105 = vmatprep.subr.mxu0 0.0
    %106 = vmatpush1.msra.mxu0 0.0
    %107 = vmatprep.subr.mxu0 0.0
    %108 = vmatpush1.msra.mxu0 0.0
    %109 = vmatprep.subr.mxu0 0.0
    %110 = vmatpush1.msra.mxu0 0.0
    %111 = vmatprep.subr.mxu0 0.0
    %112 = vmatpush1.msra.mxu0 0.0
    %113 = vmatprep.subr.mxu0 0.0
    %114 = vmatpush1.msra.mxu0 0.0
    %115 = vmatprep.subr.mxu0 0.0
    %116 = vmatpush1.msra.mxu0 0.0
    %117 = vmatprep.subr.mxu0 0.0
    %118 = vmatpush1.msra.mxu0 0.0
    %119 = vmatprep.subr.mxu0 0.0
    %120 = vmatpush1.msra.mxu0 0.0
    %121 = vmatprep.subr.mxu0 0.0
    %122 = vmatpush1.msra.mxu0 0.0
    %123 = vmatprep.subr.mxu0 0.0
    %124 = vmatpush1.msra.mxu0 0.0
    %125 = vmatprep.subr.mxu0 0.0
    %126 = vmatpush1.msra.mxu0 0.0
    %127 = vmatprep.subr.mxu0 0.0
    %128 = vmatpush1.msra.mxu0 0.0
    %129 = vmatprep.mubr.f32.mxu0 0.0
    %130 = vmatmul.mubr.f32.gmra.mrb[0].mxu0 %v63
    %v131 = vpop.f32.mrb[0].mxu0
    %v132 = vadd.f32 %v59, %v131
    %v133 = vpop.f32.mrb[0].mxu0
    %134 = vdwg.mxu0
    %135 = vst [vmem:[#allocation6] sm:$0xff] %v132
    %v136 = vmax.f32 %v132, 0.0
    %v137 = vld [vmem:[%s3] sm:$0xff]
    %v138 = vld [vmem:[%s3 + $0x8] sm:$0xff]
    %v139 = vld [vmem:[%s3 + $0x10] sm:$0xff]
    %v140 = vld [vmem:[%s3 + $0x18] sm:$0xff]
    %v141 = vld [vmem:[%s3 + $0x20] sm:$0xff]
    %v142 = vld [vmem:[%s3 + $0x28] sm:$0xff]
    %v143 = vld [vmem:[%s3 + $0x30] sm:$0xff]
    %v144 = vld [vmem:[%s3 + $0x38] sm:$0xff]
    %v145 = vld [vmem:[%s3 + $0x40] sm:$0xff]
    %v146 = vld [vmem:[%s3 + $0x48] sm:$0xff]
    %v147 = vld [vmem:[%s3 + $0x50] sm:$0xff]
    %v148 = vld [vmem:[%s3 + $0x58] sm:$0xff]
    %v149 = vld [vmem:[%s3 + $0x60] sm:$0xff]
    %v150 = vld [vmem:[%s3 + $0x68] sm:$0xff]
    %v151 = vld [vmem:[%s3 + $0x70] sm:$0xff]
    %v152 = vld [vmem:[%s3 + $0x78] sm:$0xff]
    %v153 = vld [vmem:[%s4] sm:$0x1]
    %v155 = vlaneseq
    %v156 = vshrl.u32 %v155, 7
    %v157 = vsub.s32 0, %v156
    %v158 = vrot.slane %v153, %v157
    %160 = vmatprep.subr.mxu0 0.0
    %161 = vmatpush1.msra.mxu0 %v137
    %162 = vmatprep.subr.mxu0 0.0
    %163 = vmatpush1.msra.mxu0 %v138
    %164 = vmatprep.subr.mxu0 0.0
    %165 = vmatpush1.msra.mxu0 %v139
    %166 = vmatprep.subr.mxu0 0.0
    %167 = vmatpush1.msra.mxu0 %v140
    %168 = vmatprep.subr.mxu0 0.0
    %169 = vmatpush1.msra.mxu0 %v141
    %170 = vmatprep.subr.mxu0 0.0
    %171 = vmatpush1.msra.mxu0 %v142
    %172 = vmatprep.subr.mxu0 0.0
    %173 = vmatpush1.msra.mxu0 %v143
    %174 = vmatprep.subr.mxu0 0.0
    %175 = vmatpush1.msra.mxu0 %v144
    %176 = vmatprep.subr.mxu0 0.0
    %177 = vmatpush1.msra.mxu0 %v145
    %178 = vmatprep.subr.mxu0 0.0
    %179 = vmatpush1.msra.mxu0 %v146
    %180 = vmatprep.subr.mxu0 0.0
    %181 = vmatpush1.msra.mxu0 %v147
    %182 = vmatprep.subr.mxu0 0.0
    %183 = vmatpush1.msra.mxu0 %v148
    %184 = vmatprep.subr.mxu0 0.0
    %185 = vmatpush1.msra.mxu0 %v149
    %186 = vmatprep.subr.mxu0 0.0
    %187 = vmatpush1.msra.mxu0 %v150
    %188 = vmatprep.subr.mxu0 0.0
    %189 = vmatpush1.msra.mxu0 %v151
    %190 = vmatprep.subr.mxu0 0.0
    %191 = vmatpush1.msra.mxu0 %v152
    %192 = vmatprep.subr.mxu0 0.0
    %193 = vmatpush1.msra.mxu0 0.0
    %194 = vmatprep.subr.mxu0 0.0
    %195 = vmatpush1.msra.mxu0 0.0
    %196 = vmatprep.subr.mxu0 0.0
    %197 = vmatpush1.msra.mxu0 0.0
    %198 = vmatprep.subr.mxu0 0.0
    %199 = vmatpush1.msra.mxu0 0.0
    %200 = vmatprep.subr.mxu0 0.0
    %201 = vmatpush1.msra.mxu0 0.0
    %202 = vmatprep.subr.mxu0 0.0
    %203 = vmatpush1.msra.mxu0 0.0
    %204 = vmatprep.subr.mxu0 0.0
    %205 = vmatpush1.msra.mxu0 0.0
    %206 = vmatprep.subr.mxu0 0.0
    %207 = vmatpush1.msra.mxu0 0.0
    %208 = vmatprep.subr.mxu0 0.0
    %209 = vmatpush1.msra.mxu0 0.0
    %210 = vmatprep.subr.mxu0 0.0
    %211 = vmatpush1.msra.mxu0 0.0
    %212 = vmatprep.subr.mxu0 0.0
    %213 = vmatpush1.msra.mxu0 0.0
    %214 = vmatprep.subr.mxu0 0.0
    %215 = vmatpush1.msra.mxu0 0.0
    %216 = vmatprep.subr.mxu0 0.0
    %217 = vmatpush1.msra.mxu0 0.0
    %218 = vmatprep.subr.mxu0 0.0
    %219 = vmatpush1.msra.mxu0 0.0
    %220 = vmatprep.subr.mxu0 0.0
    %221 = vmatpush1.msra.mxu0 0.0
    %222 = vmatprep.subr.mxu0 0.0
    %223 = vmatpush1.msra.mxu0 0.0
    %224 = vmatprep.mubr.f32.mxu0 0.0
    %225 = vmatmul.mubr.f32.gmra.mrb[0].mxu0 %v136
    %v226 = vpop.f32.mrb[0].mxu0
    %v227 = vadd.f32 %v158, %v226
    %v228 = vpop.f32.mrb[0].mxu0
    %229 = vdwg.mxu0
    %230 = vst [vmem:[#allocation8] sm:$0xff] %v227
    %v231 = vmax.f32 %v227, 0.0
    %v232 = vld [vmem:[%s5] sm:$0xff]
    %v233 = vld [vmem:[%s5 + $0x8] sm:$0xff]
    %v234 = vld [vmem:[%s5 + $0x10] sm:$0xff]
    %v235 = vld [vmem:[%s5 + $0x18] sm:$0xff]
    %v236 = vld [vmem:[%s5 + $0x20] sm:$0xff]
    %v237 = vld [vmem:[%s5 + $0x28] sm:$0xff]
    %v238 = vld [vmem:[%s5 + $0x30] sm:$0xff]
    %v239 = vld [vmem:[%s5 + $0x38] sm:$0xff]
    %v240 = vld [vmem:[%s5 + $0x40] sm:$0xff]
    %v241 = vld [vmem:[%s5 + $0x48] sm:$0xff]
    %v242 = vld [vmem:[%s5 + $0x50] sm:$0xff]
    %v243 = vld [vmem:[%s5 + $0x58] sm:$0xff]
    %v244 = vld [vmem:[%s5 + $0x60] sm:$0xff]
    %v245 = vld [vmem:[%s5 + $0x68] sm:$0xff]
    %v246 = vld [vmem:[%s5 + $0x70] sm:$0xff]
    %v247 = vld [vmem:[%s5 + $0x78] sm:$0xff]
    %v248 = vld [vmem:[%s6] sm:$0x1]
    %v250 = vlaneseq
    %v251 = vshrl.u32 %v250, 7
    %v252 = vsub.s32 0, %v251
    %v253 = vrot.slane %v248, %v252
    %255 = vmatprep.subr.mxu0 0.0
    %256 = vmatpush1.msra.mxu0 %v232
    %257 = vmatprep.subr.mxu0 0.0
    %258 = vmatpush1.msra.mxu0 %v233
    %259 = vmatprep.subr.mxu0 0.0
    %260 = vmatpush1.msra.mxu0 %v234
    %261 = vmatprep.subr.mxu0 0.0
    %262 = vmatpush1.msra.mxu0 %v235
    %263 = vmatprep.subr.mxu0 0.0
    %264 = vmatpush1.msra.mxu0 %v236
    %265 = vmatprep.subr.mxu0 0.0
    %266 = vmatpush1.msra.mxu0 %v237
    %267 = vmatprep.subr.mxu0 0.0
    %268 = vmatpush1.msra.mxu0 %v238
    %269 = vmatprep.subr.mxu0 0.0
    %270 = vmatpush1.msra.mxu0 %v239
    %271 = vmatprep.subr.mxu0 0.0
    %272 = vmatpush1.msra.mxu0 %v240
    %273 = vmatprep.subr.mxu0 0.0
    %274 = vmatpush1.msra.mxu0 %v241
    %275 = vmatprep.subr.mxu0 0.0
    %276 = vmatpush1.msra.mxu0 %v242
    %277 = vmatprep.subr.mxu0 0.0
    %278 = vmatpush1.msra.mxu0 %v243
    %279 = vmatprep.subr.mxu0 0.0
    %280 = vmatpush1.msra.mxu0 %v244
    %281 = vmatprep.subr.mxu0 0.0
    %282 = vmatpush1.msra.mxu0 %v245
    %283 = vmatprep.subr.mxu0 0.0
    %284 = vmatpush1.msra.mxu0 %v246
    %285 = vmatprep.subr.mxu0 0.0
    %286 = vmatpush1.msra.mxu0 %v247
    %287 = vmatprep.subr.mxu0 0.0
    %288 = vmatpush1.msra.mxu0 0.0
    %289 = vmatprep.subr.mxu0 0.0
    %290 = vmatpush1.msra.mxu0 0.0
    %291 = vmatprep.subr.mxu0 0.0
    %292 = vmatpush1.msra.mxu0 0.0
    %293 = vmatprep.subr.mxu0 0.0
    %294 = vmatpush1.msra.mxu0 0.0
    %295 = vmatprep.subr.mxu0 0.0
    %296 = vmatpush1.msra.mxu0 0.0
    %297 = vmatprep.subr.mxu0 0.0
    %298 = vmatpush1.msra.mxu0 0.0
    %299 = vmatprep.subr.mxu0 0.0
    %300 = vmatpush1.msra.mxu0 0.0
    %301 = vmatprep.subr.mxu0 0.0
    %302 = vmatpush1.msra.mxu0 0.0
    %303 = vmatprep.subr.mxu0 0.0
    %304 = vmatpush1.msra.mxu0 0.0
    %305 = vmatprep.subr.mxu0 0.0
    %306 = vmatpush1.msra.mxu0 0.0
    %307 = vmatprep.subr.mxu0 0.0
    %308 = vmatpush1.msra.mxu0 0.0
    %309 = vmatprep.subr.mxu0 0.0
    %310 = vmatpush1.msra.mxu0 0.0
    %311 = vmatprep.subr.mxu0 0.0
    %312 = vmatpush1.msra.mxu0 0.0
    %313 = vmatprep.subr.mxu0 0.0
    %314 = vmatpush1.msra.mxu0 0.0
    %315 = vmatprep.subr.mxu0 0.0
    %316 = vmatpush1.msra.mxu0 0.0
    %317 = vmatprep.subr.mxu0 0.0
    %318 = vmatpush1.msra.mxu0 0.0
    %319 = vmatprep.mubr.f32.mxu0 0.0
    %320 = vmatmul.mubr.f32.gmra.mrb[0].mxu0 %v231
    %v321 = vpop.f32.mrb[0].mxu0
    %v322 = vadd.f32 %v253, %v321
    %v323 = vpop.f32.mrb[0].mxu0
    %324 = vdwg.mxu0
    %vm325 = vcmask 80896
    %326 = vst.msk [vmem:[#allocation5] sm:$0xff] %vm325, %v322
    // Predicated region
    $region34: #{tpu_custom_call.1} parent=1 // pred_check
      _
    $region35: #{tpu_custom_call.1} parent=1 // pred_check_branch
      %328 = sbr.rel (0) target = $region37
    $region36: #{tpu_custom_call.1} parent=1 // pred_region
      %s330 = ssub.s32 128, 128
      %331 = vsyncadd [#allocation4], %s330
      %s333 = sshll.u32 [#allocation5], 4
      %s334 = int_to_ptr.vmem [resolvable:$true] %s333
      %336 = dma.vmem_to_hbm [thread:$0]  %s334, 128, %s7, [#allocation4]
    $region37: #{tpu_custom_call.1} parent=1 // pred_fallthru
      _
    // Predicated region
    $region38: #{tpu_custom_call.1} parent=1 // pred_check
      _
    $region39: #{tpu_custom_call.1} parent=1 // pred_check_branch
      %338 = sbr.rel (0) target = $region41
    $region40: #{tpu_custom_call.1} parent=1 // pred_region
      %s340 = ssub.s32 128, 128
      %341 = vsyncadd [#allocation7], %s340
      %s343 = sshll.u32 [#allocation6], 4
      %s344 = int_to_ptr.vmem [resolvable:$true] %s343
      %346 = dma.vmem_to_hbm [thread:$0]  %s344, 128, %s8, [#allocation7]
    $region41: #{tpu_custom_call.1} parent=1 // pred_fallthru
      _
    // Predicated region
    $region42: #{tpu_custom_call.1} parent=1 // pred_check
      _
    $region43: #{tpu_custom_call.1} parent=1 // pred_check_branch
      %348 = sbr.rel (0) target = $region45
    $region44: #{tpu_custom_call.1} parent=1 // pred_region
      %s350 = ssub.s32 128, 128
      %351 = vsyncadd [#allocation7], %s350
      %s353 = sshll.u32 [#allocation8], 4
      %s354 = int_to_ptr.vmem [resolvable:$true] %s353
      %356 = dma.vmem_to_hbm [thread:$0]  %s354, 128, %s9, [#allocation7]
    $region45: #{tpu_custom_call.1} parent=1 // pred_fallthru
      _
    // Predicated region
    $region46: #{tpu_custom_call.1} parent=1 // pred_check
      _
    $region47: #{tpu_custom_call.1} parent=1 // pred_check_branch
      %358 = sbr.rel (0) target = $region49
    $region48: #{tpu_custom_call.1} parent=1 // pred_region
      %359 = dma.done [#allocation4], 128
    $region49: #{tpu_custom_call.1} parent=1 // pred_fallthru
      _
    // Predicated region
    $region50: #{tpu_custom_call.1} parent=1 // pred_check
      _
    $region51: #{tpu_custom_call.1} parent=1 // pred_check_branch
      %361 = sbr.rel (0) target = $region53
    $region52: #{tpu_custom_call.1} parent=1 // pred_region
      %362 = dma.done [#allocation7], 128
    $region53: #{tpu_custom_call.1} parent=1 // pred_fallthru
      _
    // Predicated region
    $region54: #{tpu_custom_call.1} parent=1 // pred_check
      _
    $region55: #{tpu_custom_call.1} parent=1 // pred_check_branch
      %364 = sbr.rel (0) target = $region57
    $region56: #{tpu_custom_call.1} parent=1 // pred_region
      %365 = dma.done [#allocation7], 128
    $region57: #{tpu_custom_call.1} parent=1 // pred_fallthru
      _
    %366 = vsyncpa [#allocation3], 1
    %367 = vsyncpa [#allocation4], 1
    %368 = vsyncpa [#allocation7], 1

</llo_original>
